<compile_context>
chip_gen: v7x
topology: tpu7x:2x2x1
jax: 0.10.0
libtpu: 0.0.40
codegen_flags: <defaults>
</compile_context>

<pallas_src>
import math

import jax
import jax.numpy as jnp
from jax.experimental import pallas as pl
from jax.experimental.pallas import tpu as pltpu


def _squeeze_copy_kernel(x_ref, o_ref):
    # x_ref / o_ref: (block_b, C) tiles resident in VMEM. Pure copy.
    o_ref[...] = x_ref[...]


def _pick_batch_tile(B, C, itemsize, target_tile_bytes=4 << 20):
    """Largest sublane-aligned batch tile with tile bytes <= target (or full B)."""
    if B <= 8 or B % 8 != 0:
        # Tiny or unaligned batch: take the full array (block == array dim is
        # always legal w.r.t. the (8,128) constraint).
        return B
    row_bytes = max(1, C * itemsize)
    bb = target_tile_bytes // row_bytes
    bb = max(8, min(B, (bb // 8) * 8))
    # Prefer a tile that divides B evenly to avoid a ragged last step.
    while bb > 8 and B % bb != 0:
        bb -= 8
    return bb


def squeeze_last_two(x):
    """Pallas equivalent of SqueezeLastTwo: (B, C, 1, 1) -> (B, C)."""
    assert x.ndim >= 2, "SqueezeLastTwo expects at least 2 dims"
    B, C = x.shape[0], x.shape[1]
    trailing = math.prod(x.shape[2:]) if x.ndim > 2 else 1
    # x.view(B, C) only succeeds when the remaining elements collapse to 1.
    assert trailing == 1, "trailing dims must have total size 1 (e.g. (B, C, 1, 1))"
    # TODO(synk): general view(B, C) with non-unit trailing dims is not needed
    # by DomainBed and is not implemented here.

    # Zero-copy metadata reshape (same semantics as torch .view on (B, C, 1, 1)).
    x2 = x.reshape(B, C)

    itemsize = jnp.dtype(x2.dtype).itemsize
    bb = _pick_batch_tile(B, C, itemsize)
    grid = (pl.cdiv(B, bb),)

    cost = pl.CostEstimate(
        flops=0,
        transcendentals=0,
        bytes_accessed=2 * B * C * itemsize,
    )

    return pl.pallas_call(
        _squeeze_copy_kernel,
        out_shape=jax.ShapeDtypeStruct((B, C), x.dtype),
        grid=grid,
        in_specs=[
            pl.BlockSpec((bb, C), lambda i: (i, 0),
                         memory_space=pltpu.MemorySpace.VMEM),
        ],
        out_specs=pl.BlockSpec((bb, C), lambda i: (i, 0),
                               memory_space=pltpu.MemorySpace.VMEM),
        compiler_params=pltpu.CompilerParams(
            dimension_semantics=("parallel",),
        ),
        cost_estimate=cost,
    )(x2)


if __name__ == "__main__":
    key = jax.random.PRNGKey(0)
    k1, k2, k3 = jax.random.split(key, 3)

    # Small shape consistent with the module's use after a featurizer's
    # global pooling: (batch, channels, 1, 1).
    B, C = 2, 512
    x = jax.random.normal(k1, (B, C, 1, 1), dtype=jnp.float32)
    out = squeeze_last_two(x)
    jax.block_until_ready(out)
    assert out.shape == (B, C)
    assert jnp.array_equal(out, x.reshape(B, C))

    # Batch-gridded (tiled, parallel) path with lane-dense C.
    B2, C2 = 512, 384
    x2 = jax.random.normal(k2, (B2, C2, 1, 1), dtype=jnp.float32)
    out2 = squeeze_last_two(x2)
    jax.block_until_ready(out2)
    assert out2.shape == (B2, C2)
    assert jnp.array_equal(out2, x2.reshape(B2, C2))

    # Non-lane-multiple channel width and non-sublane-aligned batch
    # (full-array block path, still correct).
    B3, C3 = 3, 100
    x3 = jax.random.normal(k3, (B3, C3, 1, 1), dtype=jnp.float32)
    out3 = squeeze_last_two(x3)
    jax.block_until_ready(out3)
    assert out3.shape == (B3, C3)
    assert jnp.array_equal(out3, x3.reshape(B3, C3))

    print("KERNEL_OK")
</pallas_src>

<mosaic_0001>
module attributes {stable_mosaic.version = 11 : i64} {
  func.func @_squeeze_copy_kernel(%arg0: i32, %arg1: memref<2x512xf32, #tpu.memory_space<vmem>>, %arg2: memref<2x512xf32, #tpu.memory_space<vmem>>) attributes {dimension_semantics = [#tpu.dimension_semantics<parallel>], iteration_bounds = array<i64: 1>, scalar_prefetch = 0 : i64, scratch_operands = 0 : i64, tpu.core_type = #tpu.core_type<tc>, window_params = [{transform_indices = @transform_0, window_bounds = array<i64: 2, 512>}, {transform_indices = @transform_1, window_bounds = array<i64: 2, 512>}]} {
    %c0 = arith.constant 0 : index
    %c0_0 = arith.constant 0 : index
    %0 = vector.load %arg1[%c0, %c0_0] : memref<2x512xf32, #tpu.memory_space<vmem>>, vector<2x512xf32>
    %c0_1 = arith.constant 0 : index
    %c0_2 = arith.constant 0 : index
    %1 = vector.load %arg2[%c0_1, %c0_2] : memref<2x512xf32, #tpu.memory_space<vmem>>, vector<2x512xf32>
    tpu.vector_store %arg2[%c0_1, %c0_2], %0 {strides = array<i32>} : memref<2x512xf32, #tpu.memory_space<vmem>>, vector<2x512xf32>,
    return
  }
  func.func @transform_0(%arg0: i32) -> (i32, i32) {
    %c0_i32 = arith.constant 0 : i32
    %c0_i32_0 = arith.constant 0 : i32
    return %arg0, %c0_i32 : i32, i32
  }
  func.func @transform_1(%arg0: i32) -> (i32, i32) {
    %c0_i32 = arith.constant 0 : i32
    %c0_i32_0 = arith.constant 0 : i32
    return %arg0, %c0_i32 : i32, i32
  }
}

</mosaic_0001>

<llo_original>
// kernel: tpu_custom_call.1
$region0: #{tpu_custom_call.1}
  #allocation0 [shape = 'u32[]', space=smem, size = 0x4, offset = 0x4, fixed_abs, tag = 'smem constant byte address 0x4 - core index']
  #allocation1 [shape = 'u32[144,128]{1,0:T(1,128)}', space=vmem, size = 0x12000, scoped, tag = 'internal scratch']
  %s0 = inlined_call_operand.hbm [shape: f32[2,512], index: 0, kind: input, shape index: {}]
  %s1 = inlined_call_operand.hbm [shape: f32[2,512], index: 1, kind: output, shape index: {}]
  %s2 = sld [smem:[#allocation0]]
  $region18: #{tpu_custom_call.1} parent=0
    _
  %s4 = ssub.s32 1, %s2
  %s5 = scalar_select 0, %s4, %s2
  $region1: #{tpu_custom_call.1} parent=0
    #allocation2 [shape = 'u8[4096]{0}', space=vmem, size = 0x1000, scoped, tag = 'input window, operand 0, single buffered']
    #allocation3 [shape = 's32[1]{0}', space=sflag, size = 0x4, scoped, tag = 'scoped memory for tpu_custom_call.1']
    #allocation4 [shape = 's32[1]{0}', space=sflag, size = 0x4, scoped, tag = 'scoped memory for tpu_custom_call.1']
    #allocation5 [shape = 'u8[4096]{0}', space=vmem, size = 0x1000, scoped, tag = 'output window, operand 0, single buffered']
    %6 = vsyncpa [#allocation3], 0
    %7 = vsyncpa [#allocation4], 0
    // Predicated region
    $region2: #{tpu_custom_call.1} parent=1 // pred_check
      _
    $region3: #{tpu_custom_call.1} parent=1 // pred_check_branch
      %9 = sbr.rel (0) target = $region5
    $region4: #{tpu_custom_call.1} parent=1 // pred_region
      %s11 = ssub.s32 128, 128
      %12 = vsyncadd [#allocation3], %s11
      %s14 = sshll.u32 [#allocation2], 4
      %s15 = int_to_ptr.vmem [resolvable:$true] %s14
      %17 = dma.hbm_to_vmem [thread:$0]  %s0, 128, %s15, [#allocation3]
    $region5: #{tpu_custom_call.1} parent=1 // pred_fallthru
      _
    // Predicated region
    $region6: #{tpu_custom_call.1} parent=1 // pred_check
      _
    $region7: #{tpu_custom_call.1} parent=1 // pred_check_branch
      %19 = sbr.rel (0) target = $region9
    $region8: #{tpu_custom_call.1} parent=1 // pred_region
      %20 = dma.done [#allocation3], 128
    $region9: #{tpu_custom_call.1} parent=1 // pred_fallthru
      _
    %v21 = vld [vmem:[#allocation2] sm:$0xff]
    %22 = vst [vmem:[#allocation5] sm:$0xff] %v21
    // Predicated region
    $region10: #{tpu_custom_call.1} parent=1 // pred_check
      _
    $region11: #{tpu_custom_call.1} parent=1 // pred_check_branch
      %24 = sbr.rel (0) target = $region13
    $region12: #{tpu_custom_call.1} parent=1 // pred_region
      %s26 = ssub.s32 128, 128
      %27 = vsyncadd [#allocation4], %s26
      %s29 = sshll.u32 [#allocation5], 4
      %s30 = int_to_ptr.vmem [resolvable:$true] %s29
      %32 = dma.vmem_to_hbm [thread:$0]  %s30, 128, %s1, [#allocation4]
    $region13: #{tpu_custom_call.1} parent=1 // pred_fallthru
      _
    // Predicated region
    $region14: #{tpu_custom_call.1} parent=1 // pred_check
      _
    $region15: #{tpu_custom_call.1} parent=1 // pred_check_branch
      %34 = sbr.rel (0) target = $region17
    $region16: #{tpu_custom_call.1} parent=1 // pred_region
      %35 = dma.done [#allocation4], 128
    $region17: #{tpu_custom_call.1} parent=1 // pred_fallthru
      _
    %36 = vsyncpa [#allocation3], 1
    %37 = vsyncpa [#allocation4], 1

</llo_original>
